<compile_context>
chip_gen: v7x
topology: tpu7x:2x2x1
jax: 0.10.0
libtpu: 0.0.40
codegen_flags: <defaults>
</compile_context>

<pallas_src>
import math
import functools

import jax
import jax.numpy as jnp
from jax import lax
from jax.experimental import pallas as pl
from jax.experimental.pallas import tpu as pltpu


_DEFAULTS = {"arcface": (64.0, 0.5),
             "sphereface": (64.0, 1.35),
             "cosface": (30.0, 0.4)}

_NEG_LARGE = -1e30  # finite "-inf" (avoids inf-inf NaN corner cases)


def _angular_cos_softmax_kernel(feat_ref, w_ref, y_ref,
                                m_ref, l_ref, t_ref, fhat_ref, *,
                                s, c_total, block_c, n_inner, has_pad):
    """Grid = (P class-chunks [parallel], n_inner tiles per chunk [reduction]).

    Per chunk p it produces online-softmax partials over the NON-target classes in
    that chunk's class range plus the target-class cosine:
        m_ref (B,1): running max of s*cos over non-target classes
        l_ref (B,1): running sum of exp(s*cos - m) over non-target classes
        t_ref (B,1): cos(theta_target) if the target falls in this chunk, else 0
    """
    p = pl.program_id(0)
    kc = pl.program_id(1)

    # ---- per-chunk init: normalize features once, reset online-softmax partials ----
    @pl.when(kc == 0)
    def _init():
        f = feat_ref[...].astype(jnp.float32)                              # (B, D)
        inv = lax.rsqrt(jnp.maximum(jnp.sum(f * f, axis=-1, keepdims=True), 1e-24))
        fhat_ref[...] = f * inv
        m_ref[...] = jnp.full(m_ref.shape, _NEG_LARGE, jnp.float32)
        l_ref[...] = jnp.zeros_like(l_ref)
        t_ref[...] = jnp.zeros_like(t_ref)

    f = fhat_ref[...]                                                      # (B, D) f32
    w = w_ref[...]                                                         # (tc, D) stream dtype

    # Raw similarities on the MXU: contract the last (lane) dim of BOTH operands
    # -> (B, tc), f32 accumulation, no materialized transpose.
    f_mm = f if w.dtype == jnp.float32 else f.astype(w.dtype)
    wf_raw = lax.dot_general(f_mm, w,
                             dimension_numbers=(((1,), (1,)), ((), ())),
                             preferred_element_type=jnp.float32)           # (B, tc)

    # Weight-row squared norms via a skinny MXU matmul (keeps the big reduction off the
    # XLU): ones(1, D) contracted with (w*w) on D -> lane-major (1, tc).
    w32 = w.astype(jnp.float32)
    nrm_sq = lax.dot_general(jnp.ones((1, w32.shape[1]), jnp.float32), w32 * w32,
                             dimension_numbers=(((1,), (1,)), ((), ())),
                             preferred_element_type=jnp.float32)           # (1, tc)
    cos = wf_raw * lax.rsqrt(jnp.maximum(nrm_sq, 1e-24))                   # (B, tc)

    B, tc = cos.shape
    y = y_ref[...]                                                         # (B, 1) int32
    col = ((p * n_inner + kc) * block_c
           + lax.broadcasted_iota(jnp.int32, (B, tc), 1))

    is_target = col == y
    # Target-class cosine gather (exactly one tile over the whole grid contributes).
    t_ref[...] += jnp.sum(jnp.where(is_target, cos, 0.0), axis=-1, keepdims=True)

    # Online (streamed) log-sum-exp over the NON-target (and non-padded) classes.
    logits = s * cos
    valid = jnp.logical_not(is_target)
    if has_pad:
        valid = jnp.logical_and(valid, col < c_total)
    masked = jnp.where(valid, logits, _NEG_LARGE)

    m_prev = m_ref[...]                                                    # (B, 1)
    m_new = jnp.maximum(m_prev, jnp.max(masked, axis=-1, keepdims=True))
    # Zero invalid lanes AFTER the exp so a fully-masked tile contributes exactly 0
    # (exp(NEG - NEG) = 1 artifacts are discarded by the select).
    e = jnp.where(valid, jnp.exp(logits - m_new), 0.0)
    l_ref[...] = (l_ref[...] * jnp.exp(m_prev - m_new)
                  + jnp.sum(e, axis=-1, keepdims=True))
    m_ref[...] = m_new


def angular_penalty_sm_loss(features, weight, y_true, *,
                            loss_type="arcface", s=None, m=None,
                            block_c=None, weight_stream_dtype=None,
                            num_class_splits=2, vmem_limit_bytes=None):
    assert loss_type in _DEFAULTS, f"Unknown loss type {loss_type}"
    s_def, m_def = _DEFAULTS[loss_type]
    s = float(s_def if s is None else s)
    m = float(m_def if m is None else m)
    eps = 1e-07

    B, D = features.shape
    C, D2 = weight.shape
    assert D == D2
    P = max(1, int(num_class_splits))

    # ---- generation-aware sizing (v5e/v6e: 128 MiB VMEM, v7x: 64 MiB) ----
    try:
        info = pltpu.get_tpu_info()
        vmem_cap = int(getattr(info, "vmem_capacity_bytes", 64 * 1024 * 1024))
    except Exception:
        vmem_cap = 64 * 1024 * 1024
    if vmem_limit_bytes is None:
        vmem_limit_bytes = min(int(0.75 * vmem_cap), 96 * 1024 * 1024)

    # Optional bandwidth lever (recommended on v5e): stream the weight in bf16 while
    # keeping f32 accumulation and f32 norm math.  Default f32 for 1e-4 accuracy.
    if weight_stream_dtype is not None:
        weight = weight.astype(weight_stream_dtype)

    # Class-tile size: ~vmem/8 bytes per single weight buffer (f32-equivalent, so the
    # in-kernel f32 w*w temp is covered); 2 buffers + temp stay well under the limit.
    if block_c is None:
        budget = vmem_cap // 8
        block_c = max(128, (budget // (D * 4)) // 128 * 128)
    else:
        block_c = max(128, (int(block_c) + 127) // 128 * 128)
    # Never larger than one chunk's worth of classes.
    block_c = min(block_c, max(128, pl.cdiv(pl.cdiv(C, P), 128) * 128))

    n_inner = pl.cdiv(C, block_c * P)          # class tiles per chunk
    c_pad = n_inner * block_c * P
    has_pad = (c_pad != C)
    if has_pad:
        weight = jnp.pad(weight, ((0, c_pad - C), (0, 0)))

    y2d = y_true.astype(jnp.int32).reshape(B, 1)

    kernel = functools.partial(_angular_cos_softmax_kernel,
                               s=s, c_total=C, block_c=block_c,
                               n_inner=n_inner, has_pad=has_pad)

    m_p, l_p, t_p = pl.pallas_call(
        kernel,
        out_shape=(jax.ShapeDtypeStruct((P, B, 1), jnp.float32),   # running max
                   jax.ShapeDtypeStruct((P, B, 1), jnp.float32),   # running exp-sum
                   jax.ShapeDtypeStruct((P, B, 1), jnp.float32)),  # target cosine
        grid_spec=pltpu.PrefetchScalarGridSpec(
            num_scalar_prefetch=0,
            grid=(P, n_inner),
            in_specs=[
                pl.BlockSpec((B, D), lambda p, kc: (0, 0)),              # features (resident)
                pl.BlockSpec((block_c, D),
                             lambda p, kc: (p * n_inner + kc, 0)),       # weight tile (streamed)
                pl.BlockSpec((B, 1), lambda p, kc: (0, 0)),              # labels (resident)
            ],
            out_specs=[
                pl.BlockSpec((None, B, 1), lambda p, kc: (p, 0, 0)),
                pl.BlockSpec((None, B, 1), lambda p, kc: (p, 0, 0)),
                pl.BlockSpec((None, B, 1), lambda p, kc: (p, 0, 0)),
            ],
            scratch_shapes=[pltpu.VMEM((B, D), jnp.float32)],            # normalized features
        ),
        compiler_params=pltpu.CompilerParams(
            dimension_semantics=("parallel", "arbitrary"),   # chunks parallel, tiles reduce
            vmem_limit_bytes=int(vmem_limit_bytes),
        ),
    )(features, weight, y2d)

    # ---- tiny epilogue (O(P*B)): merge chunk partials, apply margin, log, mean ----
    tgt = jnp.sum(t_p, axis=0)[:, 0]                                   # (B,) cos(theta_y)
    m_glob = jnp.max(m_p, axis=0)                                      # (B, 1)
    l_glob = jnp.sum(l_p * jnp.exp(m_p - m_glob), axis=0)[:, 0]        # (B,)
    m_glob = m_glob[:, 0]                                              # (B,)

    if loss_type == "cosface":
        num = s * (tgt - m)
    elif loss_type == "arcface":
        x = jnp.clip(tgt, -1.0 + eps, 1.0 - eps)
        num = s * jnp.cos(jnp.arccos(x) + m)
    elif loss_type == "sphereface":
        # TODO(synk): non-integer-m cos(m*acos(x)) path is unexercised by the tests below.
        x = jnp.clip(tgt, -1.0 + eps, 1.0 - eps)
        num = s * jnp.cos(m * jnp.arccos(x))
    else:
        raise ValueError("Unknown loss type")

    mx = jnp.maximum(num, m_glob)
    L = num - (mx + jnp.log(jnp.exp(num - mx) + l_glob * jnp.exp(m_glob - mx)))
    return -jnp.mean(L)


def _reference(features, weight, y_true, *, loss_type="arcface", s=None, m=None):
    s_def, m_def = _DEFAULTS[loss_type]
    s = s_def if s is None else s
    m = m_def if m is None else m
    eps = 1e-07
    f = features / jnp.maximum(jnp.linalg.norm(features, axis=-1, keepdims=True), 1e-12)
    w = weight / jnp.maximum(jnp.linalg.norm(weight, axis=-1, keepdims=True), 1e-12)
    wf = f @ w.T
    tgt = wf[jnp.arange(f.shape[0]), y_true]
    if loss_type == "cosface":
        numerator = s * (tgt - m)
    elif loss_type == "arcface":
        numerator = s * jnp.cos(jnp.arccos(jnp.clip(tgt, -1.0 + eps, 1.0 - eps)) + m)
    else:
        numerator = s * jnp.cos(m * jnp.arccos(jnp.clip(tgt, -1.0 + eps, 1.0 - eps)))
    onehot = jax.nn.one_hot(y_true, wf.shape[1], dtype=wf.dtype)
    excl = jnp.sum(jnp.exp(s * wf) * (1.0 - onehot), axis=-1)
    L = numerator - jnp.log(jnp.exp(numerator) + excl)
    return -jnp.mean(L)


if __name__ == "__main__":
    # Small shapes consistent with the module: (batch=8, in_features=128, out_features=256)
    B, D, C = 8, 128, 256
    key = jax.random.PRNGKey(0)
    k_feat, k_w, k_y, k_w3, k_y3 = jax.random.split(key, 5)

    features = jax.random.normal(k_feat, (B, D), dtype=jnp.float32)
    bound = math.sqrt(6.0 / (D + C))   # xavier_uniform_ for (out_features, in_features)
    weight = jax.random.uniform(k_w, (C, D), dtype=jnp.float32, minval=-bound, maxval=bound)
    y_true = jax.random.randint(k_y, (B,), 0, C, dtype=jnp.int32)

    # 1) ArcFace with auto (generation-aware) tile sizing -> grid (2 chunks, 1 tile each).
    loss = angular_penalty_sm_loss(features, weight, y_true, loss_type="arcface")
    loss = jax.block_until_ready(loss)
    ref = _reference(features, weight, y_true, loss_type="arcface")
    assert jnp.allclose(loss, ref, rtol=1e-4, atol=1e-4), (loss, ref)

    # 2) CosFace with C not a multiple of the class tile -> exercises the pad/mask path.
    C2 = 200
    w2 = weight[:C2]
    y2 = jax.random.randint(jax.random.PRNGKey(1), (B,), 0, C2, dtype=jnp.int32)
    loss2 = angular_penalty_sm_loss(features, w2, y2, loss_type="cosface", block_c=128)
    loss2 = jax.block_until_ready(loss2)
    ref2 = _reference(features, w2, y2, loss_type="cosface")
    assert jnp.allclose(loss2, ref2, rtol=1e-4, atol=1e-4), (loss2, ref2)

    # 3) ArcFace with C=1000, block_c=128 -> multi-step online softmax per chunk + padding.
    C3 = 1000
    bound3 = math.sqrt(6.0 / (D + C3))
    w3 = jax.random.uniform(k_w3, (C3, D), dtype=jnp.float32, minval=-bound3, maxval=bound3)
    y3 = jax.random.randint(k_y3, (B,), 0, C3, dtype=jnp.int32)
    loss3 = angular_penalty_sm_loss(features, w3, y3, loss_type="arcface", block_c=128)
    loss3 = jax.block_until_ready(loss3)
    ref3 = _reference(features, w3, y3, loss_type="arcface")
    assert jnp.allclose(loss3, ref3, rtol=1e-4, atol=1e-4), (loss3, ref3)

    print("KERNEL_OK")
</pallas_src>

<mosaic_0001>
module attributes {stable_mosaic.version = 11 : i64} {
  func.func @_angular_cos_softmax_kernel(%arg0: i32, %arg1: i32, %arg2: memref<8x128xf32, #tpu.memory_space<vmem>>, %arg3: memref<128x128xf32, #tpu.memory_space<vmem>>, %arg4: memref<8x1xi32, #tpu.memory_space<vmem>>, %arg5: memref<1x8x1xf32, #tpu.memory_space<vmem>>, %arg6: memref<1x8x1xf32, #tpu.memory_space<vmem>>, %arg7: memref<1x8x1xf32, #tpu.memory_space<vmem>>, %arg8: memref<8x128xf32, #tpu.memory_space<vmem>>) attributes {dimension_semantics = [#tpu.dimension_semantics<parallel>, #tpu.dimension_semantics<arbitrary>], iteration_bounds = array<i64: 2, 1>, scalar_prefetch = 0 : i64, scratch_operands = 1 : i64, tpu.core_type = #tpu.core_type<tc>, window_params = [{pipeline_mode = #tpu.pipeline_mode<synchronous>, transform_indices = @transform_0, window_bounds = array<i64: 8, 128>}, {transform_indices = @transform_1, window_bounds = array<i64: 128, 128>}, {pipeline_mode = #tpu.pipeline_mode<synchronous>, transform_indices = @transform_2, window_bounds = array<i64: 8, 1>}, {transform_indices = @transform_3, window_bounds = array<i64: 1, 8, 1>}, {transform_indices = @transform_4, window_bounds = array<i64: 1, 8, 1>}, {transform_indices = @transform_5, window_bounds = array<i64: 1, 8, 1>}]} {
    %c0_i32 = arith.constant 0 : i32
    %0 = arith.cmpi eq, %arg1, %c0_i32 : i32
    %1 = arith.extui %0 : i1 to i32
    %c0_i32_0 = arith.constant 0 : i32
    %2 = arith.cmpi ne, %1, %c0_i32_0 : i32
    scf.if %2 {
      %c0_35 = arith.constant 0 : index
      %c0_36 = arith.constant 0 : index
      %62 = vector.load %arg2[%c0_35, %c0_36] : memref<8x128xf32, #tpu.memory_space<vmem>>, vector<8x128xf32>
      %63 = arith.mulf %62, %62 : vector<8x128xf32>
      %cst_37 = arith.constant dense<0.000000e+00> : vector<8xf32>
      %64 = vector.multi_reduction <add>, %63, %cst_37 [1] : vector<8x128xf32> to vector<8xf32>
      %65 = vector.shape_cast %64 : vector<8xf32> to vector<8x1xf32>
      %cst_38 = arith.constant 1.000000e-24 : f32
      %66 = vector.broadcast %cst_38 : f32 to vector<8x1xf32>
      %67 = arith.maximumf %65, %66 : vector<8x1xf32>
      %68 = math.rsqrt %67 : vector<8x1xf32>
      %69 = vector.broadcast %68 : vector<8x1xf32> to vector<8x128xf32>
      %70 = arith.mulf %62, %69 : vector<8x128xf32>
      %c0_39 = arith.constant 0 : index
      %c0_40 = arith.constant 0 : index
      %71 = vector.load %arg8[%c0_39, %c0_40] : memref<8x128xf32, #tpu.memory_space<vmem>>, vector<8x128xf32>
      tpu.vector_store %arg8[%c0_39, %c0_40], %70 {strides = array<i32>} : memref<8x128xf32, #tpu.memory_space<vmem>>, vector<8x128xf32>,
      %cst_41 = arith.constant -1.000000e+30 : f32
      %72 = vector.broadcast %cst_41 : f32 to vector<8x1xf32>
      %c0_42 = arith.constant 0 : index
      %c0_43 = arith.constant 0 : index
      %c0_44 = arith.constant 0 : index
      %73 = vector.load %arg5[%c0_42, %c0_43, %c0_44] : memref<1x8x1xf32, #tpu.memory_space<vmem>>, vector<1x8x1xf32>
      %74 = vector.shape_cast %73 : vector<1x8x1xf32> to vector<8x1xf32>
      %75 = vector.shape_cast %72 : vector<8x1xf32> to vector<1x8x1xf32>
      tpu.vector_store %arg5[%c0_42, %c0_43, %c0_44], %75 {strides = array<i32>} : memref<1x8x1xf32, #tpu.memory_space<vmem>>, vector<1x8x1xf32>,
      %cst_45 = arith.constant 0.000000e+00 : f32
      %76 = vector.broadcast %cst_45 : f32 to vector<8x1xf32>
      %c0_46 = arith.constant 0 : index
      %c0_47 = arith.constant 0 : index
      %c0_48 = arith.constant 0 : index
      %77 = vector.load %arg6[%c0_46, %c0_47, %c0_48] : memref<1x8x1xf32, #tpu.memory_space<vmem>>, vector<1x8x1xf32>
      %78 = vector.shape_cast %77 : vector<1x8x1xf32> to vector<8x1xf32>
      %79 = vector.shape_cast %76 : vector<8x1xf32> to vector<1x8x1xf32>
      tpu.vector_store %arg6[%c0_46, %c0_47, %c0_48], %79 {strides = array<i32>} : memref<1x8x1xf32, #tpu.memory_space<vmem>>, vector<1x8x1xf32>,
      %cst_49 = arith.constant 0.000000e+00 : f32
      %80 = vector.broadcast %cst_49 : f32 to vector<8x1xf32>
      %c0_50 = arith.constant 0 : index
      %c0_51 = arith.constant 0 : index
      %c0_52 = arith.constant 0 : index
      %81 = vector.load %arg7[%c0_50, %c0_51, %c0_52] : memref<1x8x1xf32, #tpu.memory_space<vmem>>, vector<1x8x1xf32>
      %82 = vector.shape_cast %81 : vector<1x8x1xf32> to vector<8x1xf32>
      %83 = vector.shape_cast %80 : vector<8x1xf32> to vector<1x8x1xf32>
      tpu.vector_store %arg7[%c0_50, %c0_51, %c0_52], %83 {strides = array<i32>} : memref<1x8x1xf32, #tpu.memory_space<vmem>>, vector<1x8x1xf32>,
    } else {
    }
    %c0 = arith.constant 0 : index
    %c0_1 = arith.constant 0 : index
    %3 = vector.load %arg8[%c0, %c0_1] : memref<8x128xf32, #tpu.memory_space<vmem>>, vector<8x128xf32>
    %c0_2 = arith.constant 0 : index
    %c0_3 = arith.constant 0 : index
    %4 = vector.load %arg3[%c0_2, %c0_3] : memref<128x128xf32, #tpu.memory_space<vmem>>, vector<128x128xf32>
    %cst = arith.constant dense<0.000000e+00> : vector<8x128xf32>
    %5 = tpu.matmul %3, %4, %cst {dimension_numbers = #tpu.dot_dimension_numbers<[1], [1], [0], [0], [0, 0, 1, 0], [], []>} : vector<8x128xf32>, vector<128x128xf32>, vector<8x128xf32> -> vector<8x128xf32>
    %cst_4 = arith.constant 1.000000e+00 : f32
    %6 = vector.broadcast %cst_4 : f32 to vector<1x128xf32>
    %7 = arith.mulf %4, %4 : vector<128x128xf32>
    %cst_5 = arith.constant dense<0.000000e+00> : vector<1x128xf32>
    %8 = tpu.matmul %6, %7, %cst_5 {dimension_numbers = #tpu.dot_dimension_numbers<[1], [1], [0], [0], [0, 0, 1, 0], [], []>} : vector<1x128xf32>, vector<128x128xf32>, vector<1x128xf32> -> vector<1x128xf32>
    %cst_6 = arith.constant 1.000000e-24 : f32
    %9 = vector.broadcast %cst_6 : f32 to vector<1x128xf32>
    %10 = arith.maximumf %8, %9 : vector<1x128xf32>
    %11 = math.rsqrt %10 : vector<1x128xf32>
    %12 = vector.broadcast %11 : vector<1x128xf32> to vector<8x128xf32>
    %13 = arith.mulf %5, %12 : vector<8x128xf32>
    %c0_7 = arith.constant 0 : index
    %c0_8 = arith.constant 0 : index
    %14 = vector.load %arg4[%c0_7, %c0_8] : memref<8x1xi32, #tpu.memory_space<vmem>>, vector<8x1xi32>
    %c1_i32 = arith.constant 1 : i32
    %15 = arith.muli %arg0, %c1_i32 : i32
    %16 = arith.addi %15, %arg1 : i32
    %c128_i32 = arith.constant 128 : i32
    %17 = arith.muli %16, %c128_i32 : i32
    %18 = tpu.iota {dimensions = array<i32: 1>} : vector<8x128xi32>
    %19 = vector.broadcast %17 : i32 to vector<8x128xi32>
    %20 = arith.addi %19, %18 : vector<8x128xi32>
    %21 = vector.broadcast %14 : vector<8x1xi32> to vector<8x128xi32>
    %22 = arith.cmpi eq, %20, %21 : vector<8x128xi32>
    %c0_9 = arith.constant 0 : index
    %c0_10 = arith.constant 0 : index
    %c0_11 = arith.constant 0 : index
    %23 = vector.load %arg7[%c0_9, %c0_10, %c0_11] : memref<1x8x1xf32, #tpu.memory_space<vmem>>, vector<1x8x1xf32>
    %24 = vector.shape_cast %23 : vector<1x8x1xf32> to vector<8x1xf32>
    %cst_12 = arith.constant 0.000000e+00 : f32
    %25 = vector.broadcast %cst_12 : f32 to vector<8x128xf32>
    %26 = arith.select %22, %13, %25 : vector<8x128xi1>, vector<8x128xf32>
    %cst_13 = arith.constant dense<0.000000e+00> : vector<8xf32>
    %27 = vector.multi_reduction <add>, %26, %cst_13 [1] : vector<8x128xf32> to vector<8xf32>
    %28 = vector.shape_cast %27 : vector<8xf32> to vector<8x1xf32>
    %29 = arith.addf %24, %28 : vector<8x1xf32>
    %c0_14 = arith.constant 0 : index
    %c0_15 = arith.constant 0 : index
    %c0_16 = arith.constant 0 : index
    %30 = vector.load %arg7[%c0_14, %c0_15, %c0_16] : memref<1x8x1xf32, #tpu.memory_space<vmem>>, vector<1x8x1xf32>
    %31 = vector.shape_cast %30 : vector<1x8x1xf32> to vector<8x1xf32>
    %32 = vector.shape_cast %29 : vector<8x1xf32> to vector<1x8x1xf32>
    tpu.vector_store %arg7[%c0_14, %c0_15, %c0_16], %32 {strides = array<i32>} : memref<1x8x1xf32, #tpu.memory_space<vmem>>, vector<1x8x1xf32>,
    %cst_17 = arith.constant 6.400000e+01 : f32
    %33 = vector.broadcast %cst_17 : f32 to vector<8x128xf32>
    %34 = arith.mulf %33, %13 : vector<8x128xf32>
    %cst_18 = arith.constant dense<true> : vector<8x128xi1>
    %35 = arith.xori %22, %cst_18 : vector<8x128xi1>
    %cst_19 = arith.constant -1.000000e+30 : f32
    %36 = vector.broadcast %cst_19 : f32 to vector<8x128xf32>
    %37 = arith.select %35, %34, %36 : vector<8x128xi1>, vector<8x128xf32>
    %c0_20 = arith.constant 0 : index
    %c0_21 = arith.constant 0 : index
    %c0_22 = arith.constant 0 : index
    %38 = vector.load %arg5[%c0_20, %c0_21, %c0_22] : memref<1x8x1xf32, #tpu.memory_space<vmem>>, vector<1x8x1xf32>
    %39 = vector.shape_cast %38 : vector<1x8x1xf32> to vector<8x1xf32>
    %cst_23 = arith.constant dense<0xFF800000> : vector<8xf32>
    %40 = vector.multi_reduction <maximumf>, %37, %cst_23 [1] : vector<8x128xf32> to vector<8xf32>
    %41 = vector.shape_cast %40 : vector<8xf32> to vector<8x1xf32>
    %42 = arith.maximumf %39, %41 : vector<8x1xf32>
    %43 = vector.broadcast %42 : vector<8x1xf32> to vector<8x128xf32>
    %44 = arith.subf %34, %43 : vector<8x128xf32>
    %45 = math.exp %44 : vector<8x128xf32>
    %cst_24 = arith.constant 0.000000e+00 : f32
    %46 = vector.broadcast %cst_24 : f32 to vector<8x128xf32>
    %47 = arith.select %35, %45, %46 : vector<8x128xi1>, vector<8x128xf32>
    %c0_25 = arith.constant 0 : index
    %c0_26 = arith.constant 0 : index
    %c0_27 = arith.constant 0 : index
    %48 = vector.load %arg6[%c0_25, %c0_26, %c0_27] : memref<1x8x1xf32, #tpu.memory_space<vmem>>, vector<1x8x1xf32>
    %49 = vector.shape_cast %48 : vector<1x8x1xf32> to vector<8x1xf32>
    %50 = arith.subf %39, %42 : vector<8x1xf32>
    %51 = math.exp %50 : vector<8x1xf32>
    %52 = arith.mulf %49, %51 : vector<8x1xf32>
    %cst_28 = arith.constant dense<0.000000e+00> : vector<8xf32>
    %53 = vector.multi_reduction <add>, %47, %cst_28 [1] : vector<8x128xf32> to vector<8xf32>
    %54 = vector.shape_cast %53 : vector<8xf32> to vector<8x1xf32>
    %55 = arith.addf %52, %54 : vector<8x1xf32>
    %c0_29 = arith.constant 0 : index
    %c0_30 = arith.constant 0 : index
    %c0_31 = arith.constant 0 : index
    %56 = vector.load %arg6[%c0_29, %c0_30, %c0_31] : memref<1x8x1xf32, #tpu.memory_space<vmem>>, vector<1x8x1xf32>
    %57 = vector.shape_cast %56 : vector<1x8x1xf32> to vector<8x1xf32>
    %58 = vector.shape_cast %55 : vector<8x1xf32> to vector<1x8x1xf32>
    tpu.vector_store %arg6[%c0_29, %c0_30, %c0_31], %58 {strides = array<i32>} : memref<1x8x1xf32, #tpu.memory_space<vmem>>, vector<1x8x1xf32>,
    %c0_32 = arith.constant 0 : index
    %c0_33 = arith.constant 0 : index
    %c0_34 = arith.constant 0 : index
    %59 = vector.load %arg5[%c0_32, %c0_33, %c0_34] : memref<1x8x1xf32, #tpu.memory_space<vmem>>, vector<1x8x1xf32>
    %60 = vector.shape_cast %59 : vector<1x8x1xf32> to vector<8x1xf32>
    %61 = vector.shape_cast %42 : vector<8x1xf32> to vector<1x8x1xf32>
    tpu.vector_store %arg5[%c0_32, %c0_33, %c0_34], %61 {strides = array<i32>} : memref<1x8x1xf32, #tpu.memory_space<vmem>>, vector<1x8x1xf32>,
    return
  }
  func.func @transform_0(%arg0: i32, %arg1: i32) -> (i32, i32) {
    %c0_i32 = arith.constant 0 : i32
    %c0_i32_0 = arith.constant 0 : i32
    %c0_i32_1 = arith.constant 0 : i32
    return %c0_i32, %c0_i32_0 : i32, i32
  }
  func.func @transform_1(%arg0: i32, %arg1: i32) -> (i32, i32) {
    %c1_i32 = arith.constant 1 : i32
    %0 = arith.muli %arg0, %c1_i32 : i32
    %1 = arith.addi %0, %arg1 : i32
    %c0_i32 = arith.constant 0 : i32
    %c0_i32_0 = arith.constant 0 : i32
    return %1, %c0_i32 : i32, i32
  }
  func.func @transform_2(%arg0: i32, %arg1: i32) -> (i32, i32) {
    %c0_i32 = arith.constant 0 : i32
    %c0_i32_0 = arith.constant 0 : i32
    %c0_i32_1 = arith.constant 0 : i32
    return %c0_i32, %c0_i32_0 : i32, i32
  }
  func.func @transform_3(%arg0: i32, %arg1: i32) -> (i32, i32, i32) {
    %c0_i32 = arith.constant 0 : i32
    %c0_i32_0 = arith.constant 0 : i32
    %c0_i32_1 = arith.constant 0 : i32
    return %arg0, %c0_i32, %c0_i32_0 : i32, i32, i32
  }
  func.func @transform_4(%arg0: i32, %arg1: i32) -> (i32, i32, i32) {
    %c0_i32 = arith.constant 0 : i32
    %c0_i32_0 = arith.constant 0 : i32
    %c0_i32_1 = arith.constant 0 : i32
    return %arg0, %c0_i32, %c0_i32_0 : i32, i32, i32
  }
  func.func @transform_5(%arg0: i32, %arg1: i32) -> (i32, i32, i32) {
    %c0_i32 = arith.constant 0 : i32
    %c0_i32_0 = arith.constant 0 : i32
    %c0_i32_1 = arith.constant 0 : i32
    return %arg0, %c0_i32, %c0_i32_0 : i32, i32, i32
  }
}

</mosaic_0001>

<llo_original>
// kernel: tpu_custom_call.1
$region0: #{tpu_custom_call.1}
  #allocation0 [shape = 'u32[]', space=smem, size = 0x4, offset = 0x4, fixed_abs, tag = 'smem constant byte address 0x4 - core index']
  #allocation1 [shape = 'u32[144,128]{1,0:T(1,128)}', space=vmem, size = 0x12000, scoped, tag = 'internal scratch']
  #allocation2 [shape = 'f32[8,128]{1,0:T(8,128)}', space=vmem, size = 0x1000, scoped, tag = 'scratch operand']
  %s0 = inlined_call_operand.vmem [shape: f32[8,128], index: 0, kind: input, shape index: {}]
  %s1 = inlined_call_operand.hbm [shape: f32[256,128], index: 1, kind: input, shape index: {}]
  %s2 = inlined_call_operand.vmem [shape: s32[8,1], index: 2, kind: input, shape index: {}]
  %s3 = inlined_call_operand.vmem [shape: f32[2,8,1], index: 3, kind: output, shape index: {0}]
  %s4 = inlined_call_operand.vmem [shape: f32[2,8,1], index: 4, kind: output, shape index: {1}]
  %s5 = inlined_call_operand.vmem [shape: f32[2,8,1], index: 5, kind: output, shape index: {2}]
  %6 = xla_tuple %s3, %s4, %s5
  %s7 = sld [smem:[#allocation0]]
  $region69: #{tpu_custom_call.1} parent=0
    _
  %s9 = ssub.s32 1, %s7
  %s10 = scalar_select 0, %s9, %s7
  $region1: #{tpu_custom_call.1} parent=0
    #allocation3 [shape = 'u8[131072]{0}', space=vmem, size = 0x20000, scoped, tag = 'input window, operand 1']
    #allocation4 [shape = 's32[2]{0}', space=sflag, size = 0x8, scoped, tag = 'scoped memory for tpu_custom_call.1']
    %11 = vsyncpa [#allocation4], 0
    %s12 = scalar_lea.sflag [#allocation4], 1
    %13 = vsyncpa %s12, 0
    loop: start=0, step=1, limit=4
    $region2: #{tpu_custom_call.1} parent=1 // loop_pre_header
      _
    $region3: #{tpu_custom_call.1} parent=1 // loop_header
      %s15 = sphi 0, %s19
      %p16 = scmp.ge.s32.totalorder %s15, 4
      %s22 = sphi 0, %s34
      %s23 = sphi 0, %s30
      %s24 = sphi 0, %s22
      %s25 = sphi 0, %s23
      %s26 = sphi 0, %s24
      %s27 = sphi 0, %s25
      %s35 = sphi 0, %s35
      %s37 = sphi 0, %s35
      %s38 = sphi 0, %s37
      %s52 = sphi 0, %s38
      %s60 = sphi 0, %s62
      %s63 = sphi 0, %s60
      %s64 = sphi 0, %s63
      %s80 = sphi 0, %s64
      %s84 = sphi 0, %s84
      %s86 = sphi 0, %s84
      %s87 = sphi 0, %s86
      %s101 = sphi 0, %s87
      %s107 = sphi 0, %s109
      %s110 = sphi 0, %s107
      %s111 = sphi 0, %s110
      %s127 = sphi 0, %s111
      %s133 = sphi 0, %s135
      %s136 = sphi 0, %s133
      %s137 = sphi 0, %s136
      %s153 = sphi 0, %s137
      %s159 = sphi 0, %s161
      %s162 = sphi 0, %s159
      %s163 = sphi 0, %s162
      %s179 = sphi 0, %s163
    $region4: #{tpu_custom_call.1} parent=1 // loop_header_branch
      %18 = sbr.rel (%p16) target = $region8
    $region5: #{tpu_custom_call.1} parent=1 // loop_body
      %s20 = ssub.s32 %s15, 1
      %s21 = ssub.s32 %s15, 2
      %s28 = sadd.s32 1, %s23
      %p29 = scmp.ge.s32.totalorder %s28, 1
      %s30 = scalar_select %p29, 0, %s28
      %s31 = sadd.s32 1, %s22
      %s32 = scalar_select %p29, %s31, %s22
      %p33 = scmp.ge.s32.totalorder %s32, 2
      %s34 = scalar_select %p33, 0, %s32
      %s36 = sadd.s32 %s35, 1
      %p39 = scmp.eq.s32.totalorder %s15, 1
      %p40 = scmp.ne.s32.totalorder %s35, %s37
      %p41 = scmp.eq.s32.totalorder %s15, 0
      %p42 = por %p40, %p41
      %p43 = scmp.ne.s32.totalorder %s35, %s37
      %p44 = scmp.eq.s32.totalorder %s20, 1
      %p45 = por %p43, %p44
      %p46 = scmp.ne.s32.totalorder %s37, %s38
      %p47 = scmp.eq.s32.totalorder %s20, 0
      %p48 = por %p46, %p47
      %p49 = scmp.ne.s32.totalorder %s37, %s38
      %p50 = scmp.eq.s32.totalorder %s21, 1
      %p51 = por %p49, %p50
      %p53 = scmp.ne.s32.totalorder %s38, %s52
      %p54 = scmp.eq.s32.totalorder %s21, 0
      %p55 = por %p53, %p54
      %s56 = sadd.s32 %s22, %s23
      %s57 = sadd.s32 %s34, %s30
      %s58 = ssub.s32 %s56, %s57
      %p59 = scmp.eq.s32.totalorder %s58, 0
      %s61 = sadd.s32 %s60, 1
      %s62 = scalar_select %p59, %s60, %s61
      %p65 = pneg %p59
      %p66 = scmp.eq.s32.totalorder %s15, 1
      %p67 = por %p65, %p66
      %p68 = scmp.ne.s32.totalorder %s60, %s63
      %p69 = scmp.eq.s32.totalorder %s15, 0
      %p70 = por %p68, %p69
      %p71 = scmp.ne.s32.totalorder %s60, %s63
      %p72 = scmp.eq.s32.totalorder %s20, 1
      %p73 = por %p71, %p72
      %p74 = scmp.ne.s32.totalorder %s63, %s64
      %p75 = scmp.eq.s32.totalorder %s20, 0
      %p76 = por %p74, %p75
      %p77 = scmp.ne.s32.totalorder %s63, %s64
      %p78 = scmp.eq.s32.totalorder %s21, 1
      %p79 = por %p77, %p78
      %p81 = scmp.ne.s32.totalorder %s64, %s80
      %p82 = scmp.eq.s32.totalorder %s21, 0
      %p83 = por %p81, %p82
      %s85 = sadd.s32 %s84, 1
      %p88 = scmp.eq.s32.totalorder %s15, 1
      %p89 = scmp.ne.s32.totalorder %s84, %s86
      %p90 = scmp.eq.s32.totalorder %s15, 0
      %p91 = por %p89, %p90
      %p92 = scmp.ne.s32.totalorder %s84, %s86
      %p93 = scmp.eq.s32.totalorder %s20, 1
      %p94 = por %p92, %p93
      %p95 = scmp.ne.s32.totalorder %s86, %s87
      %p96 = scmp.eq.s32.totalorder %s20, 0
      %p97 = por %p95, %p96
      %p98 = scmp.ne.s32.totalorder %s86, %s87
      %p99 = scmp.eq.s32.totalorder %s21, 1
      %p100 = por %p98, %p99
      %p102 = scmp.ne.s32.totalorder %s87, %s101
      %p103 = scmp.eq.s32.totalorder %s21, 0
      %p104 = por %p102, %p103
      %s105 = ssub.s32 %s22, %s34
      %p106 = scmp.eq.s32.totalorder %s105, 0
      %s108 = sadd.s32 %s107, 1
      %s109 = scalar_select %p106, %s107, %s108
      %p112 = pneg %p106
      %p113 = scmp.eq.s32.totalorder %s15, 1
      %p114 = por %p112, %p113
      %p115 = scmp.ne.s32.totalorder %s107, %s110
      %p116 = scmp.eq.s32.totalorder %s15, 0
      %p117 = por %p115, %p116
      %p118 = scmp.ne.s32.totalorder %s107, %s110
      %p119 = scmp.eq.s32.totalorder %s20, 1
      %p120 = por %p118, %p119
      %p121 = scmp.ne.s32.totalorder %s110, %s111
      %p122 = scmp.eq.s32.totalorder %s20, 0
      %p123 = por %p121, %p122
      %p124 = scmp.ne.s32.totalorder %s110, %s111
      %p125 = scmp.eq.s32.totalorder %s21, 1
      %p126 = por %p124, %p125
      %p128 = scmp.ne.s32.totalorder %s111, %s127
      %p129 = scmp.eq.s32.totalorder %s21, 0
      %p130 = por %p128, %p129
      %s131 = ssub.s32 %s22, %s34
      %p132 = scmp.eq.s32.totalorder %s131, 0
      %s134 = sadd.s32 %s133, 1
      %s135 = scalar_select %p132, %s133, %s134
      %p138 = pneg %p132
      %p139 = scmp.eq.s32.totalorder %s15, 1
      %p140 = por %p138, %p139
      %p141 = scmp.ne.s32.totalorder %s133, %s136
      %p142 = scmp.eq.s32.totalorder %s15, 0
      %p143 = por %p141, %p142
      %p144 = scmp.ne.s32.totalorder %s133, %s136
      %p145 = scmp.eq.s32.totalorder %s20, 1
      %p146 = por %p144, %p145
      %p147 = scmp.ne.s32.totalorder %s136, %s137
      %p148 = scmp.eq.s32.totalorder %s20, 0
      %p149 = por %p147, %p148
      %p150 = scmp.ne.s32.totalorder %s136, %s137
      %p151 = scmp.eq.s32.totalorder %s21, 1
      %p152 = por %p150, %p151
      %p154 = scmp.ne.s32.totalorder %s137, %s153
      %p155 = scmp.eq.s32.totalorder %s21, 0
      %p156 = por %p154, %p155
      %s157 = ssub.s32 %s22, %s34
      %p158 = scmp.eq.s32.totalorder %s157, 0
      %s160 = sadd.s32 %s159, 1
      %s161 = scalar_select %p158, %s159, %s160
      %p164 = pneg %p158
      %p165 = scmp.eq.s32.totalorder %s15, 1
      %p166 = por %p164, %p165
      %p167 = scmp.ne.s32.totalorder %s159, %s162
      %p168 = scmp.eq.s32.totalorder %s15, 0
      %p169 = por %p167, %p168
      %p170 = scmp.ne.s32.totalorder %s159, %s162
      %p171 = scmp.eq.s32.totalorder %s20, 1
      %p172 = por %p170, %p171
      %p173 = scmp.ne.s32.totalorder %s162, %s163
      %p174 = scmp.eq.s32.totalorder %s20, 0
      %p175 = por %p173, %p174
      %p176 = scmp.ne.s32.totalorder %s162, %s163
      %p177 = scmp.eq.s32.totalorder %s21, 1
      %p178 = por %p176, %p177
      %p180 = scmp.ne.s32.totalorder %s163, %s179
      %p181 = scmp.eq.s32.totalorder %s21, 0
      %p182 = por %p180, %p181
      %p183 = scmp.le.s32.totalorder 1, %s15
      %p184 = scmp.lt.s32.totalorder %s15, 3
      %p185 = pnand %p183, %p184
      %p186 = pneg %p185
      // Predicated region
      $region9: #{tpu_custom_call.1} parent=5 // pred_check
        _
      $region10: #{tpu_custom_call.1} parent=5 // pred_check_branch
        %188 = sbr.rel (%p185) target = $region12
      $region11: #{tpu_custom_call.1} parent=5 // pred_region
        %s189 = ssub.s32 %s15, 1
        // Predicated region
        $region13: #{tpu_custom_call.1} parent=11 // pred_check
          %p190 = pneg %p48
        $region14: #{tpu_custom_call.1} parent=11 // pred_check_branch
          %192 = sbr.rel (%p190) target = $region16
        $region15: #{tpu_custom_call.1} parent=11 // pred_region
          _
        $region16: #{tpu_custom_call.1} parent=11 // pred_fallthru
          _
        // Predicated region
        $region17: #{tpu_custom_call.1} parent=11 // pred_check
          %p193 = pneg %p97
        $region18: #{tpu_custom_call.1} parent=11 // pred_check_branch
          %195 = sbr.rel (%p193) target = $region20
        $region19: #{tpu_custom_call.1} parent=11 // pred_region
          _
        $region20: #{tpu_custom_call.1} parent=11 // pred_fallthru
          _
      $region12: #{tpu_custom_call.1} parent=5 // pred_fallthru
        _
      %p196 = scmp.lt.s32.totalorder %s15, 2
      // Predicated region
      $region21: #{tpu_custom_call.1} parent=5 // pred_check
        %p197 = pneg %p196
      $region22: #{tpu_custom_call.1} parent=5 // pred_check_branch
        %199 = sbr.rel (%p197) target = $region24
      $region23: #{tpu_custom_call.1} parent=5 // pred_region
        // Predicated region
        $region25: #{tpu_custom_call.1} parent=23 // pred_check
          %p200 = pneg %p70
        $region26: #{tpu_custom_call.1} parent=23 // pred_check_branch
          %202 = sbr.rel (%p200) target = $region28
        $region27: #{tpu_custom_call.1} parent=23 // pred_region
          %s203 = sand.u32 %s60, 1
          %s204 = scalar_lea.sflag [#allocation4], %s203
          %s205 = sand.u32 %s60, 1
          %s206 = smul.addr %s205, 128
          %s207 = scalar_lea.vmem [#allocation3], %s206
          %s208 = sadd.s32 %s22, %s23
          %s209 = smul.u32 16, %s208
          %s211 = ssub.s32 2048, 2048
          %212 = vsyncadd %s204, %s211
          %s213 = smul.addr %s209, 128
          %s214 = scalar_lea.hbm %s1, %s213
          %s215 = sshll.u32 %s207, 4
          %s216 = int_to_ptr.vmem [resolvable:$true] %s215
          %221 = dma.hbm_to_vmem [thread:$0]  %s214, 2048, %s216, %s204, 128, 128, 8
        $region28: #{tpu_custom_call.1} parent=23 // pred_fallthru
          _
      $region24: #{tpu_custom_call.1} parent=5 // pred_fallthru
        _
      %p222 = scmp.le.s32.totalorder 1, %s15
      %p223 = scmp.lt.s32.totalorder %s15, 3
      %p224 = pnand %p222, %p223
      %p225 = pneg %p224
      // Predicated region
      $region29: #{tpu_custom_call.1} parent=5 // pred_check
        _
      $region30: #{tpu_custom_call.1} parent=5 // pred_check_branch
        %227 = sbr.rel (%p224) target = $region32
      $region31: #{tpu_custom_call.1} parent=5 // pred_region
        %s228 = ssub.s32 %s15, 1
        %s229 = sand.u32 %s63, 1
        %s230 = scalar_lea.sflag [#allocation4], %s229
        %s231 = sand.u32 %s63, 1
        %s232 = smul.addr %s231, 128
        %s233 = scalar_lea.vmem [#allocation3], %s232
        // Predicated region
        $region33: #{tpu_custom_call.1} parent=31 // pred_check
          %p234 = pneg %p76
        $region34: #{tpu_custom_call.1} parent=31 // pred_check_branch
          %236 = sbr.rel (%p234) target = $region36
        $region35: #{tpu_custom_call.1} parent=31 // pred_region
          %237 = dma.done %s230, 2048
        $region36: #{tpu_custom_call.1} parent=31 // pred_fallthru
          _
        %p238 = pneg %p48
        %p239 = pneg %p45
        %s240 = sand.u32 %s63, 1
        %s241 = scalar_lea.sflag [#allocation4], %s240
        %s242 = sand.u32 %s63, 1
        %s243 = smul.addr %s242, 128
        %s244 = scalar_lea.vmem [#allocation3], %s243
        %p245 = pneg %p76
        %p246 = pneg %p73
        %p247 = pneg %p97
        %p248 = pneg %p94
        %p249 = pneg %p123
        %p250 = pneg %p120
        %p251 = scmp.lt.s32.totalorder %s24, 1
        %s252 = scalar_select %p251, %s24, 1
        %s253 = smul.addr %s252, 8
        %s254 = scalar_lea.vmem %s3, %s253
        %p255 = pneg %p149
        %p256 = pneg %p146
        %p257 = scmp.lt.s32.totalorder %s24, 1
        %s258 = scalar_select %p257, %s24, 1
        %s259 = smul.addr %s258, 8
        %s260 = scalar_lea.vmem %s4, %s259
        %p261 = pneg %p175
        %p262 = pneg %p172
        %p263 = scmp.lt.s32.totalorder %s24, 1
        %s264 = scalar_select %p263, %s24, 1
        %s265 = smul.addr %s264, 8
        %s266 = scalar_lea.vmem %s5, %s265
        %s267 = sadd.s32 %s24, %s25
        %s268 = smul.u32 16, %s267
        %p269 = scmp.lt.s32.totalorder %s24, 1
        %s270 = scalar_select %p269, %s24, 1
        %s271 = smul.addr %s270, 8
        %s272 = scalar_lea.vmem %s3, %s271
        %p273 = scmp.lt.s32.totalorder %s24, 1
        %s274 = scalar_select %p273, %s24, 1
        %s275 = smul.addr %s274, 8
        %s276 = scalar_lea.vmem %s4, %s275
        %p277 = scmp.lt.s32.totalorder %s24, 1
        %s278 = scalar_select %p277, %s24, 1
        %s279 = smul.addr %s278, 8
        %s280 = scalar_lea.vmem %s5, %s279
        %p281 = scmp.eq.s32.totalorder %s25, 0
        // Predicated region
        $region37: #{tpu_custom_call.1} parent=31 // pred_check
          %p282 = pneg %p281
        $region38: #{tpu_custom_call.1} parent=31 // pred_check_branch
          %284 = sbr.rel (%p282) target = $region40
        $region39: #{tpu_custom_call.1} parent=31 // pred_region
          %v285 = vld [vmem:[%s0] sm:$0xff]
          %v286 = vmul.f32 %v285, %v285
          %287 = vadd.xlane.f32.xlu0 %v286
          %v288 = vpop.xlane.xlu0 %287
          %v289 = vmax.f32 %v288, 1e-24
          %v290 = vrsqrt.pop %v289
          %v291 = vmul.f32 %v285, %v290
          %292 = vst [vmem:[#allocation2] sm:$0xff] %v291
          %vm293 = vcmask 7168
          %294 = vst.msk [vmem:[%s272] sm:$0xff] %vm293, -1e+30
          %295 = vst.msk [vmem:[%s276] sm:$0xff] %vm293, 0.0
          %296 = vst.msk [vmem:[%s280] sm:$0xff] %vm293, 0.0
        $region40: #{tpu_custom_call.1} parent=31 // pred_fallthru
          _
        %v297 = vld [vmem:[#allocation2] sm:$0xff]
        %v298 = vld [vmem:[%s233] sm:$0xff]
        %v299 = vld [vmem:[%s233 + $0x8] sm:$0xff]
        %v300 = vld [vmem:[%s233 + $0x10] sm:$0xff]
        %v301 = vld [vmem:[%s233 + $0x18] sm:$0xff]
        %v302 = vld [vmem:[%s233 + $0x20] sm:$0xff]
        %v303 = vld [vmem:[%s233 + $0x28] sm:$0xff]
        %v304 = vld [vmem:[%s233 + $0x30] sm:$0xff]
        %v305 = vld [vmem:[%s233 + $0x38] sm:$0xff]
        %v306 = vld [vmem:[%s233 + $0x40] sm:$0xff]
        %v307 = vld [vmem:[%s233 + $0x48] sm:$0xff]
        %v308 = vld [vmem:[%s233 + $0x50] sm:$0xff]
        %v309 = vld [vmem:[%s233 + $0x58] sm:$0xff]
        %v310 = vld [vmem:[%s233 + $0x60] sm:$0xff]
        %v311 = vld [vmem:[%s233 + $0x68] sm:$0xff]
        %v312 = vld [vmem:[%s233 + $0x70] sm:$0xff]
        %v313 = vld [vmem:[%s233 + $0x78] sm:$0xff]
        %314 = vmatprep.subr.mxu0 0.0
        %315 = vmatpush1.xpose.msra.mxu0 %v298
        %316 = vmatprep.subr.mxu0 0.0
        %317 = vmatpush1.xpose.msra.mxu0 %v299
        %318 = vmatprep.subr.mxu0 0.0
        %319 = vmatpush1.xpose.msra.mxu0 %v300
        %320 = vmatprep.subr.mxu0 0.0
        %321 = vmatpush1.xpose.msra.mxu0 %v301
        %322 = vmatprep.subr.mxu0 0.0
        %323 = vmatpush1.xpose.msra.mxu0 %v302
        %324 = vmatprep.subr.mxu0 0.0
        %325 = vmatpush1.xpose.msra.mxu0 %v303
        %326 = vmatprep.subr.mxu0 0.0
        %327 = vmatpush1.xpose.msra.mxu0 %v304
        %328 = vmatprep.subr.mxu0 0.0
        %329 = vmatpush1.xpose.msra.mxu0 %v305
        %330 = vmatprep.subr.mxu0 0.0
        %331 = vmatpush1.xpose.msra.mxu0 %v306
        %332 = vmatprep.subr.mxu0 0.0
        %333 = vmatpush1.xpose.msra.mxu0 %v307
        %334 = vmatprep.subr.mxu0 0.0
        %335 = vmatpush1.xpose.msra.mxu0 %v308
        %336 = vmatprep.subr.mxu0 0.0
        %337 = vmatpush1.xpose.msra.mxu0 %v309
        %338 = vmatprep.subr.mxu0 0.0
        %339 = vmatpush1.xpose.msra.mxu0 %v310
        %340 = vmatprep.subr.mxu0 0.0
        %341 = vmatpush1.xpose.msra.mxu0 %v311
        %342 = vmatprep.subr.mxu0 0.0
        %343 = vmatpush1.xpose.msra.mxu0 %v312
        %344 = vmatprep.subr.mxu0 0.0
        %345 = vmatpush1.xpose.msra.mxu0 %v313
        %346 = vmatprep.subr.mxu0 0.0
        %347 = vmatpush1.xpose.msra.mxu0 0.0
        %348 = vmatprep.subr.mxu0 0.0
        %349 = vmatpush1.xpose.msra.mxu0 0.0
        %350 = vmatprep.subr.mxu0 0.0
        %351 = vmatpush1.xpose.msra.mxu0 0.0
        %352 = vmatprep.subr.mxu0 0.0
        %353 = vmatpush1.xpose.msra.mxu0 0.0
        %354 = vmatprep.subr.mxu0 0.0
        %355 = vmatpush1.xpose.msra.mxu0 0.0
        %356 = vmatprep.subr.mxu0 0.0
        %357 = vmatpush1.xpose.msra.mxu0 0.0
        %358 = vmatprep.subr.mxu0 0.0
        %359 = vmatpush1.xpose.msra.mxu0 0.0
        %360 = vmatprep.subr.mxu0 0.0
        %361 = vmatpush1.xpose.msra.mxu0 0.0
        %362 = vmatprep.subr.mxu0 0.0
        %363 = vmatpush1.xpose.msra.mxu0 0.0
        %364 = vmatprep.subr.mxu0 0.0
        %365 = vmatpush1.xpose.msra.mxu0 0.0
        %366 = vmatprep.subr.mxu0 0.0
        %367 = vmatpush1.xpose.msra.mxu0 0.0
        %368 = vmatprep.subr.mxu0 0.0
        %369 = vmatpush1.xpose.msra.mxu0 0.0
        %370 = vmatprep.subr.mxu0 0.0
        %371 = vmatpush1.xpose.msra.mxu0 0.0
        %372 = vmatprep.subr.mxu0 0.0
        %373 = vmatpush1.xpose.msra.mxu0 0.0
        %374 = vmatprep.subr.mxu0 0.0
        %375 = vmatpush1.xpose.msra.mxu0 0.0
        %376 = vmatprep.subr.mxu0 0.0
        %377 = vmatpush1.xpose.msra.mxu0 0.0
        %378 = vmatprep.mubr.f32.mxu0 0.0
        %379 = vmatmul.mubr.f32.gmra.mrb[0].mxu0 %v297
        %v380 = vpop.f32.mrb[0].mxu0
        %v381 = vadd.f32 0.0, %v380
        %v382 = vpop.f32.mrb[0].mxu0
        %383 = vdwg.mxu0
        %v384 = vmul.f32 %v298, %v298
        %v385 = vmul.f32 %v299, %v299
        %v386 = vmul.f32 %v300, %v300
        %v387 = vmul.f32 %v301, %v301
        %v388 = vmul.f32 %v302, %v302
        %v389 = vmul.f32 %v303, %v303
        %v390 = vmul.f32 %v304, %v304
        %v391 = vmul.f32 %v305, %v305
        %v392 = vmul.f32 %v306, %v306
        %v393 = vmul.f32 %v307, %v307
        %v394 = vmul.f32 %v308, %v308
        %v395 = vmul.f32 %v309, %v309
        %v396 = vmul.f32 %v310, %v310
        %v397 = vmul.f32 %v311, %v311
        %v398 = vmul.f32 %v312, %v312
        %v399 = vmul.f32 %v313, %v313
        %400 = vmatprep.subr.mxu0 0.0
        %401 = vmatpush1.xpose.msra.mxu0 %v384
        %402 = vmatprep.subr.mxu0 0.0
        %403 = vmatpush1.xpose.msra.mxu0 %v385
        %404 = vmatprep.subr.mxu0 0.0
        %405 = vmatpush1.xpose.msra.mxu0 %v386
        %406 = vmatprep.subr.mxu0 0.0
        %407 = vmatpush1.xpose.msra.mxu0 %v387
        %408 = vmatprep.subr.mxu0 0.0
        %409 = vmatpush1.xpose.msra.mxu0 %v388
        %410 = vmatprep.subr.mxu0 0.0
        %411 = vmatpush1.xpose.msra.mxu0 %v389
        %412 = vmatprep.subr.mxu0 0.0
        %413 = vmatpush1.xpose.msra.mxu0 %v390
        %414 = vmatprep.subr.mxu0 0.0
        %415 = vmatpush1.xpose.msra.mxu0 %v391
        %416 = vmatprep.subr.mxu0 0.0
        %417 = vmatpush1.xpose.msra.mxu0 %v392
        %418 = vmatprep.subr.mxu0 0.0
        %419 = vmatpush1.xpose.msra.mxu0 %v393
        %420 = vmatprep.subr.mxu0 0.0
        %421 = vmatpush1.xpose.msra.mxu0 %v394
        %422 = vmatprep.subr.mxu0 0.0
        %423 = vmatpush1.xpose.msra.mxu0 %v395
        %424 = vmatprep.subr.mxu0 0.0
        %425 = vmatpush1.xpose.msra.mxu0 %v396
        %426 = vmatprep.subr.mxu0 0.0
        %427 = vmatpush1.xpose.msra.mxu0 %v397
        %428 = vmatprep.subr.mxu0 0.0
        %429 = vmatpush1.xpose.msra.mxu0 %v398
        %430 = vmatprep.subr.mxu0 0.0
        %431 = vmatpush1.xpose.msra.mxu0 %v399
        %432 = vmatprep.subr.mxu0 0.0
        %433 = vmatpush1.xpose.msra.mxu0 0.0
        %434 = vmatprep.subr.mxu0 0.0
        %435 = vmatpush1.xpose.msra.mxu0 0.0
        %436 = vmatprep.subr.mxu0 0.0
        %437 = vmatpush1.xpose.msra.mxu0 0.0
        %438 = vmatprep.subr.mxu0 0.0
        %439 = vmatpush1.xpose.msra.mxu0 0.0
        %440 = vmatprep.subr.mxu0 0.0
        %441 = vmatpush1.xpose.msra.mxu0 0.0
        %442 = vmatprep.subr.mxu0 0.0
        %443 = vmatpush1.xpose.msra.mxu0 0.0
        %444 = vmatprep.subr.mxu0 0.0
        %445 = vmatpush1.xpose.msra.mxu0 0.0
        %446 = vmatprep.subr.mxu0 0.0
        %447 = vmatpush1.xpose.msra.mxu0 0.0
        %448 = vmatprep.subr.mxu0 0.0
        %449 = vmatpush1.xpose.msra.mxu0 0.0
        %450 = vmatprep.subr.mxu0 0.0
        %451 = vmatpush1.xpose.msra.mxu0 0.0
        %452 = vmatprep.subr.mxu0 0.0
        %453 = vmatpush1.xpose.msra.mxu0 0.0
        %454 = vmatprep.subr.mxu0 0.0
        %455 = vmatpush1.xpose.msra.mxu0 0.0
        %456 = vmatprep.subr.mxu0 0.0
        %457 = vmatpush1.xpose.msra.mxu0 0.0
        %458 = vmatprep.subr.mxu0 0.0
        %459 = vmatpush1.xpose.msra.mxu0 0.0
        %460 = vmatprep.subr.mxu0 0.0
        %461 = vmatpush1.xpose.msra.mxu0 0.0
        %462 = vmatprep.subr.mxu0 0.0
        %463 = vmatpush1.xpose.msra.mxu0 0.0
        %464 = vmatprep.mubr.f32.mxu0 0.0
        %465 = vmatmul.mubr.f32.gmra.mrb[0].mxu0 1.0
        %v466 = vpop.f32.mrb[0].mxu0
        %v467 = vadd.f32 0.0, %v466
        %v468 = vpop.f32.mrb[0].mxu0
        %469 = vdwg.mxu0
        %v470 = vmax.f32 %v467, 1e-24
        %v471 = vrsqrt.pop %v470
        %v472 = vlaneseq
        %v473 = vshrl.u32 %v472, 7
        %v474 = vsub.s32 0, %v473
        %v475 = vrot.slane %v471, %v474
        %v476 = vmul.f32 %v381, %v475
        %v477 = vld [vmem:[%s2] sm:$0xff]
        %s478 = sadd.s32 %s24, %s25
        %s479 = smul.u32 %s478, 128
        %v480 = vlaneseq
        %v481 = vand.u32 %v480, 127
        %v482 = vstv %s479
        %v483 = vadd.s32 %v482, %v481
        %484 = vset.pattern.permute.xlu0 0
        %485 = vperm.xlu0 %484, %v477
        %v486 = vpop.permute.xlu0 %485
        %vm487 = vcmp.eq.s32.totalorder %v483, %v486
        %v488 = vld [vmem:[%s280] sm:$0xff]
        %v489 = vsel %vm487, %v476, 0.0
        %490 = vadd.xlane.f32.xlu0 %v489
        %v491 = vpop.xlane.xlu0 %490
        %v492 = vadd.f32 %v488, %v491
        %vm493 = vcmask 7168
        %494 = vst.msk [vmem:[%s280] sm:$0xff] %vm493, %v492
        %v495 = vmul.f32 %v476, 64.0
        %vm496 = vmxor %vm487, 1
        %v497 = vsel %vm496, %v495, -1e+30
        %v498 = vld [vmem:[%s272] sm:$0xff]
        %499 = vmax.xlane.f32.xlu0 %v497
        %v500 = vpop.xlane.xlu0 %499
        %v501 = vmax.f32 %v498, %v500
        %503 = vset.pattern.permute.xlu0 0
        %504 = vperm.xlu0 %503, %v501
        %v505 = vpop.permute.xlu0 %504
        %v507 = vsub.f32 %v495, %v505
        %v508 = vmul.f32 %v507, 1.442695
        %v509 = vpow.pop %v508
        %v510 = vsel %vm496, %v509, 0.0
        %v511 = vld [vmem:[%s276] sm:$0xff]
        %v512 = vsub.f32 %v498, %v501
        %v513 = vmul.f32 %v512, 1.442695
        %v514 = vpow.pop %v513
        %v515 = vmul.f32 %v511, %v514
        %516 = vadd.xlane.f32.xlu0 %v510
        %v517 = vpop.xlane.xlu0 %516
        %v518 = vadd.f32 %v515, %v517
        %519 = vst.msk [vmem:[%s276] sm:$0xff] %vm493, %v518
        %520 = vst.msk [vmem:[%s272] sm:$0xff] %vm493, %v501
        %p521 = scmp.lt.s32.totalorder %s24, 1
        %s522 = scalar_select %p521, %s24, 1
        %s523 = smul.addr %s522, 8
        %s524 = scalar_lea.vmem %s3, %s523
        %p525 = scmp.lt.s32.totalorder %s24, 1
        %s526 = scalar_select %p525, %s24, 1
        %s527 = smul.addr %s526, 8
        %s528 = scalar_lea.vmem %s4, %s527
        %p529 = scmp.lt.s32.totalorder %s24, 1
        %s530 = scalar_select %p529, %s24, 1
        %s531 = smul.addr %s530, 8
        %s532 = scalar_lea.vmem %s5, %s531
        // Predicated region
        $region41: #{tpu_custom_call.1} parent=31 // pred_check
          %p533 = pneg %p120
        $region42: #{tpu_custom_call.1} parent=31 // pred_check_branch
          %535 = sbr.rel (%p533) target = $region44
        $region43: #{tpu_custom_call.1} parent=31 // pred_region
          _
        $region44: #{tpu_custom_call.1} parent=31 // pred_fallthru
          _
        // Predicated region
        $region45: #{tpu_custom_call.1} parent=31 // pred_check
          %p536 = pneg %p146
        $region46: #{tpu_custom_call.1} parent=31 // pred_check_branch
          %538 = sbr.rel (%p536) target = $region48
        $region47: #{tpu_custom_call.1} parent=31 // pred_region
          _
        $region48: #{tpu_custom_call.1} parent=31 // pred_fallthru
          _
        // Predicated region
        $region49: #{tpu_custom_call.1} parent=31 // pred_check
          %p539 = pneg %p172
        $region50: #{tpu_custom_call.1} parent=31 // pred_check_branch
          %541 = sbr.rel (%p539) target = $region52
        $region51: #{tpu_custom_call.1} parent=31 // pred_region
          _
        $region52: #{tpu_custom_call.1} parent=31 // pred_fallthru
          _
      $region32: #{tpu_custom_call.1} parent=5 // pred_fallthru
        _
      %p542 = scmp.le.s32.totalorder 2, %s15
      // Predicated region
      $region53: #{tpu_custom_call.1} parent=5 // pred_check
        %p543 = pneg %p542
      $region54: #{tpu_custom_call.1} parent=5 // pred_check_branch
        %545 = sbr.rel (%p543) target = $region56
      $region55: #{tpu_custom_call.1} parent=5 // pred_region
        %s546 = ssub.s32 %s15, 2
        // Predicated region
        $region57: #{tpu_custom_call.1} parent=55 // pred_check
          %p547 = pneg %p126
        $region58: #{tpu_custom_call.1} parent=55 // pred_check_branch
          %549 = sbr.rel (%p547) target = $region60
        $region59: #{tpu_custom_call.1} parent=55 // pred_region
          %p550 = scmp.lt.s32.totalorder %s26, 1
          %s551 = scalar_select %p550, %s26, 1
          %s552 = smul.addr %s551, 8
          %s553 = scalar_lea.vmem %s3, %s552
        $region60: #{tpu_custom_call.1} parent=55 // pred_fallthru
          _
        // Predicated region
        $region61: #{tpu_custom_call.1} parent=55 // pred_check
          %p554 = pneg %p152
        $region62: #{tpu_custom_call.1} parent=55 // pred_check_branch
          %556 = sbr.rel (%p554) target = $region64
        $region63: #{tpu_custom_call.1} parent=55 // pred_region
          %p557 = scmp.lt.s32.totalorder %s26, 1
          %s558 = scalar_select %p557, %s26, 1
          %s559 = smul.addr %s558, 8
          %s560 = scalar_lea.vmem %s4, %s559
        $region64: #{tpu_custom_call.1} parent=55 // pred_fallthru
          _
        // Predicated region
        $region65: #{tpu_custom_call.1} parent=55 // pred_check
          %p561 = pneg %p178
        $region66: #{tpu_custom_call.1} parent=55 // pred_check_branch
          %563 = sbr.rel (%p561) target = $region68
        $region67: #{tpu_custom_call.1} parent=55 // pred_region
          %p564 = scmp.lt.s32.totalorder %s26, 1
          %s565 = scalar_select %p564, %s26, 1
          %s566 = smul.addr %s565, 8
          %s567 = scalar_lea.vmem %s5, %s566
        $region68: #{tpu_custom_call.1} parent=55 // pred_fallthru
          _
      $region56: #{tpu_custom_call.1} parent=5 // pred_fallthru
        _
    $region6: #{tpu_custom_call.1} parent=1 // loop_footer
      %s19 = sadd.s32 1, %s15
    $region7: #{tpu_custom_call.1} parent=1 // loop_footer_branch
      %14 = sbr.rel target = $region3
    $region8: #{tpu_custom_call.1} parent=1 // loop_exit
      _
    %568 = vsyncpa [#allocation4], 1
    %s569 = scalar_lea.sflag [#allocation4], 1
    %570 = vsyncpa %s569, 1

</llo_original>
